<compile_context>
chip_gen: v6e
topology: v6e:2x2x1
jax: 0.10.0
libtpu: 0.0.40
codegen_flags: <defaults>
</compile_context>

<pallas_src>
import jax
import jax.numpy as jnp
from jax.experimental import pallas as pl
from jax.experimental.pallas import tpu as pltpu

LANES = 128            # lane width (last dim)
SUBLANES = 8           # f32 sublane count (accumulator rows)
TM = 1024              # rows per grid step: 1024*128*4B = 512 KiB per f32 tile
_ALIGN = SUBLANES * LANES   # 1024 elements: one (8, 128) f32 vreg
_NUM_PARTS = 2         # parallel split of the reduction (v7x has 2 TensorCores)


def _softplus_neg(x):
    """Numerically stable softplus(-x): z = -x; max(z,0) + log1p(exp(-|z|))."""
    z = -x
    return jnp.maximum(z, 0.0) + jnp.log1p(jnp.exp(-jnp.abs(z)))


def _softplus_neg_sum_kernel(x_ref, o_ref):
    """Fold sum over one (TM, 128) tile of softplus(-x) into an (8, 128) block."""
    s = pl.program_id(1)                       # reduction step within this partition

    x = x_ref[...].astype(jnp.float32)
    sp = _softplus_neg(x)

    tm, tn = x_ref.shape                       # static; tm multiple of 8, tn == 128
    # Pure VALU fold of the tile into one vreg-shaped partial sum.
    partial = sp.reshape(tm // SUBLANES, SUBLANES, tn).sum(axis=0)

    @pl.when(s == 0)
    def _():
        o_ref[...] = jnp.zeros_like(o_ref)

    o_ref[...] += partial


def softplus_g_loss(fake):
    """Pallas equivalent of SoftplusGLoss().forward(fake)."""
    n_total = fake.size
    flat = fake.reshape(-1)                    # free reshape, keeps input dtype

    # Largest prefix whose 128-lane row count is a multiple of 8.  For typical
    # NCHW activations this covers the whole tensor and the reshape is free.
    n_main = (n_total // _ALIGN) * _ALIGN

    partial = jnp.zeros((), jnp.float32)
    if n_main < n_total:
        # < 1024 ragged elements: negligible, plain jnp.
        partial = partial + jnp.sum(_softplus_neg(flat[n_main:].astype(jnp.float32)))

    if n_main > 0:
        rows = n_main // LANES                 # multiple of 8
        tm = min(TM, rows)                     # multiple of 8 (== rows for small inputs)
        total_steps = rows // tm
        n_parts = _NUM_PARTS if total_steps >= _NUM_PARTS else 1
        steps_per_part = total_steps // n_parts
        n_kernel_rows = n_parts * steps_per_part * tm

        x2d = (flat if n_main == n_total else flat[:n_main]).reshape(rows, LANES)

        if n_kernel_rows < rows:
            # Trailing rows not covered by full tiles (at most ~1 MiB): plain jnp.
            partial = partial + jnp.sum(
                _softplus_neg(x2d[n_kernel_rows:].astype(jnp.float32)))

        acc = pl.pallas_call(
            _softplus_neg_sum_kernel,
            out_shape=jax.ShapeDtypeStruct((n_parts * SUBLANES, LANES), jnp.float32),
            grid_spec=pltpu.PrefetchScalarGridSpec(
                num_scalar_prefetch=0,
                grid=(n_parts, steps_per_part),
                in_specs=[pl.BlockSpec(
                    (tm, LANES),
                    lambda p, s: (p * steps_per_part + s, 0))],
                out_specs=pl.BlockSpec(
                    (SUBLANES, LANES), lambda p, s: (p, 0)),
            ),
            compiler_params=pltpu.CompilerParams(
                dimension_semantics=("parallel", "arbitrary"),
            ),
        )(x2d)
        partial = partial + jnp.sum(acc)       # single cross-lane/sublane reduce

    return partial / jnp.float32(n_total)


if __name__ == "__main__":
    key = jax.random.PRNGKey(0)
    # `fake` = discriminator logits for fake images, NCHW
    fake = jax.random.normal(key, (2, 4, 16, 16), dtype=jnp.float32)

    loss = softplus_g_loss(fake)
    loss = jax.block_until_ready(loss)

    # reference check (plain JAX)
    ref = jnp.mean(jax.nn.softplus(-fake))
    assert jnp.allclose(loss, ref, atol=1e-5, rtol=1e-5), (loss, ref)

    print("KERNEL_OK")
</pallas_src>

<mosaic_0001>
module attributes {stable_mosaic.version = 11 : i64} {
  func.func @_softplus_neg_sum_kernel(%arg0: i32, %arg1: i32, %arg2: memref<16x128xf32, #tpu.memory_space<vmem>>, %arg3: memref<8x128xf32, #tpu.memory_space<vmem>>) attributes {dimension_semantics = [#tpu.dimension_semantics<parallel>, #tpu.dimension_semantics<arbitrary>], iteration_bounds = array<i64: 1, 1>, scalar_prefetch = 0 : i64, scratch_operands = 0 : i64, tpu.core_type = #tpu.core_type<tc>, window_params = [{transform_indices = @transform_0, window_bounds = array<i64: 16, 128>}, {transform_indices = @transform_1, window_bounds = array<i64: 8, 128>}]} {
    %c0 = arith.constant 0 : index
    %c0_0 = arith.constant 0 : index
    %0 = vector.load %arg2[%c0, %c0_0] : memref<16x128xf32, #tpu.memory_space<vmem>>, vector<16x128xf32>
    %cst = arith.constant 0.000000e+00 : f32
    %1 = vector.broadcast %cst : f32 to vector<16x128xf32>
    %2 = arith.subf %1, %0 : vector<16x128xf32>
    %cst_1 = arith.constant 0.000000e+00 : f32
    %3 = vector.broadcast %cst_1 : f32 to vector<16x128xf32>
    %4 = arith.maximumf %2, %3 : vector<16x128xf32>
    %5 = math.absf %2 : vector<16x128xf32>
    %cst_2 = arith.constant 0.000000e+00 : f32
    %6 = vector.broadcast %cst_2 : f32 to vector<16x128xf32>
    %7 = arith.subf %6, %5 : vector<16x128xf32>
    %8 = math.exp %7 : vector<16x128xf32>
    %9 = math.log1p %8 : vector<16x128xf32>
    %10 = arith.addf %4, %9 : vector<16x128xf32>
    %11 = vector.shape_cast %10 : vector<16x128xf32> to vector<2x8x128xf32>
    %cst_3 = arith.constant dense<0.000000e+00> : vector<8x128xf32>
    %12 = vector.multi_reduction <add>, %11, %cst_3 [0] : vector<2x8x128xf32> to vector<8x128xf32>
    %c0_i32 = arith.constant 0 : i32
    %13 = arith.cmpi eq, %arg1, %c0_i32 : i32
    %14 = arith.extui %13 : i1 to i32
    %c0_i32_4 = arith.constant 0 : i32
    %15 = arith.cmpi ne, %14, %c0_i32_4 : i32
    scf.if %15 {
      %cst_9 = arith.constant 0.000000e+00 : f32
      %19 = vector.broadcast %cst_9 : f32 to vector<8x128xf32>
      %c0_10 = arith.constant 0 : index
      %c0_11 = arith.constant 0 : index
      %20 = vector.load %arg3[%c0_10, %c0_11] : memref<8x128xf32, #tpu.memory_space<vmem>>, vector<8x128xf32>
      tpu.vector_store %arg3[%c0_10, %c0_11], %19 {strides = array<i32>} : memref<8x128xf32, #tpu.memory_space<vmem>>, vector<8x128xf32>,
    } else {
    }
    %c0_5 = arith.constant 0 : index
    %c0_6 = arith.constant 0 : index
    %16 = vector.load %arg3[%c0_5, %c0_6] : memref<8x128xf32, #tpu.memory_space<vmem>>, vector<8x128xf32>
    %17 = arith.addf %16, %12 : vector<8x128xf32>
    %c0_7 = arith.constant 0 : index
    %c0_8 = arith.constant 0 : index
    %18 = vector.load %arg3[%c0_7, %c0_8] : memref<8x128xf32, #tpu.memory_space<vmem>>, vector<8x128xf32>
    tpu.vector_store %arg3[%c0_7, %c0_8], %17 {strides = array<i32>} : memref<8x128xf32, #tpu.memory_space<vmem>>, vector<8x128xf32>,
    return
  }
  func.func @transform_0(%arg0: i32, %arg1: i32) -> (i32, i32) {
    %c1_i32 = arith.constant 1 : i32
    %0 = arith.muli %arg0, %c1_i32 : i32
    %1 = arith.addi %0, %arg1 : i32
    %c0_i32 = arith.constant 0 : i32
    %c0_i32_0 = arith.constant 0 : i32
    return %1, %c0_i32 : i32, i32
  }
  func.func @transform_1(%arg0: i32, %arg1: i32) -> (i32, i32) {
    %c0_i32 = arith.constant 0 : i32
    %c0_i32_0 = arith.constant 0 : i32
    return %arg0, %c0_i32 : i32, i32
  }
}

</mosaic_0001>

<llo_original>
// kernel: tpu_custom_call.1
$region0: #{tpu_custom_call.1}
  #allocation0 [shape = 'u32[]', space=smem, size = 0x4, offset = 0x4, fixed_abs, tag = 'smem constant byte address 0x4 - core index']
  #allocation1 [shape = 'u32[144,128]{1,0:T(1,128)}', space=vmem, size = 0x12000, scoped, tag = 'internal scratch']
  %s0 = inlined_call_operand.hbm [shape: f32[16,128], index: 0, kind: input, shape index: {}]
  %s1 = inlined_call_operand.hbm [shape: f32[8,128], index: 1, kind: output, shape index: {}]
  %s2 = sld [smem:[#allocation0]]
  $region22: #{tpu_custom_call.1} parent=0
    _
  %s4 = ssub.s32 1, %s2
  %s5 = scalar_select 0, %s4, %s2
  $region1: #{tpu_custom_call.1} parent=0
    #allocation2 [shape = 'u8[8192]{0}', space=vmem, size = 0x2000, scoped, tag = 'input window, operand 0, single buffered']
    #allocation3 [shape = 's32[1]{0}', space=sflag, size = 0x4, scoped, tag = 'scoped memory for tpu_custom_call.1']
    #allocation4 [shape = 's32[1]{0}', space=sflag, size = 0x4, scoped, tag = 'scoped memory for tpu_custom_call.1']
    #allocation5 [shape = 'u8[4096]{0}', space=vmem, size = 0x1000, scoped, tag = 'output window, operand 0, single buffered']
    %6 = vsyncpa [#allocation3], 0
    %7 = vsyncpa [#allocation4], 0
    // Predicated region
    $region2: #{tpu_custom_call.1} parent=1 // pred_check
      _
    $region3: #{tpu_custom_call.1} parent=1 // pred_check_branch
      %9 = sbr.rel (0) target = $region5
    $region4: #{tpu_custom_call.1} parent=1 // pred_region
      %s10 = sadd.s32 0, 0
      %s11 = smul.u32 2, %s10
      %s13 = ssub.s32 256, 256
      %14 = vsyncadd [#allocation3], %s13
      %s15 = smul.addr %s11, 128
      %s16 = scalar_lea.hbm %s0, %s15
      %s17 = sshll.u32 [#allocation2], 4
      %s18 = int_to_ptr.vmem [resolvable:$true] %s17
      %23 = dma.hbm_to_vmem [thread:$0]  %s16, 256, %s18, [#allocation3], 128, 128, 8
    $region5: #{tpu_custom_call.1} parent=1 // pred_fallthru
      _
    // Predicated region
    $region6: #{tpu_custom_call.1} parent=1 // pred_check
      _
    $region7: #{tpu_custom_call.1} parent=1 // pred_check_branch
      %25 = sbr.rel (0) target = $region9
    $region8: #{tpu_custom_call.1} parent=1 // pred_region
      %26 = dma.done [#allocation3], 256
    $region9: #{tpu_custom_call.1} parent=1 // pred_fallthru
      _
    %s27 = sadd.s32 0, 0
    %s28 = smul.u32 2, %s27
    %v29 = vld [vmem:[#allocation2] sm:$0xff]
    %v30 = vld [vmem:[#allocation2 + $0x8] sm:$0xff]
    %v31 = vsub.f32 0.0, %v29
    %v32 = vsub.f32 0.0, %v30
    %v33 = vmax.f32 %v31, 0.0
    %v34 = vmax.f32 %v32, 0.0
    %v35 = vand.u32 2147483647, %v31
    %v36 = vand.u32 2147483647, %v32
    %v37 = vsub.f32 0.0, %v35
    %v38 = vsub.f32 0.0, %v36
    %v39 = vmul.f32 %v37, 1.442695
    %v40 = vpow.pop %v39
    %v41 = vmul.f32 %v38, 1.442695
    %v42 = vpow.pop %v41
    %v43 = vadd.f32 %v40, 1.0
    %v44 = vlog2.pop %v43
    %v45 = vmul.f32 %v44, 0.6931472
    %v46 = vmul.f32 -0.5, %v40
    %v47 = vadd.f32 %v46, 1.0
    %v48 = vmul.f32 %v47, %v40
    %v49 = vand.u32 2147483647, %v40
    %vm50 = vcmp.lt.f32.partialorder %v49, 0.0004427343
    %v51 = vsel %vm50, %v48, %v45
    %v52 = vadd.f32 %v42, 1.0
    %v53 = vlog2.pop %v52
    %v54 = vmul.f32 %v53, 0.6931472
    %v55 = vmul.f32 -0.5, %v42
    %v56 = vadd.f32 %v55, 1.0
    %v57 = vmul.f32 %v56, %v42
    %v58 = vand.u32 2147483647, %v42
    %vm59 = vcmp.lt.f32.partialorder %v58, 0.0004427343
    %v60 = vsel %vm59, %v57, %v54
    %v61 = vadd.f32 %v33, %v51
    %v62 = vadd.f32 %v34, %v60
    %v63 = vadd.f32 %v61, %v62
    %p64 = scmp.eq.s32.totalorder 0, 0
    // Predicated region
    $region10: #{tpu_custom_call.1} parent=1 // pred_check
      %p65 = pneg %p64
    $region11: #{tpu_custom_call.1} parent=1 // pred_check_branch
      %67 = sbr.rel (%p65) target = $region13
    $region12: #{tpu_custom_call.1} parent=1 // pred_region
      %68 = vst [vmem:[#allocation5] sm:$0xff] 0.0
    $region13: #{tpu_custom_call.1} parent=1 // pred_fallthru
      _
    %v69 = vld [vmem:[#allocation5] sm:$0xff]
    %v70 = vadd.f32 %v69, %v63
    %71 = vst [vmem:[#allocation5] sm:$0xff] %v70
    // Predicated region
    $region14: #{tpu_custom_call.1} parent=1 // pred_check
      _
    $region15: #{tpu_custom_call.1} parent=1 // pred_check_branch
      %73 = sbr.rel (0) target = $region17
    $region16: #{tpu_custom_call.1} parent=1 // pred_region
      %s75 = ssub.s32 128, 128
      %76 = vsyncadd [#allocation4], %s75
      %s78 = sshll.u32 [#allocation5], 4
      %s79 = int_to_ptr.vmem [resolvable:$true] %s78
      %81 = dma.vmem_to_hbm [thread:$0]  %s79, 128, %s1, [#allocation4]
    $region17: #{tpu_custom_call.1} parent=1 // pred_fallthru
      _
    // Predicated region
    $region18: #{tpu_custom_call.1} parent=1 // pred_check
      _
    $region19: #{tpu_custom_call.1} parent=1 // pred_check_branch
      %83 = sbr.rel (0) target = $region21
    $region20: #{tpu_custom_call.1} parent=1 // pred_region
      %84 = dma.done [#allocation4], 128
    $region21: #{tpu_custom_call.1} parent=1 // pred_fallthru
      _
    %85 = vsyncpa [#allocation3], 1
    %86 = vsyncpa [#allocation4], 1

</llo_original>
